<compile_context>
chip_gen: v7x
topology: tpu7x:2x2x1
jax: 0.10.0
libtpu: 0.0.40
codegen_flags: <defaults>
</compile_context>

<pallas_src>
import jax
import jax.numpy as jnp
from jax.experimental import pallas as pl
from jax.experimental.pallas import tpu as pltpu


# ----------------------------------------------------------------------------
# Pallas kernel: fused  relu(theta(x) + phi_up + b_phi) -> psi -> sigmoid -> x*alpha
#   x_ref : (Cin, tm, 128) VMEM  skip-connection pixels (channel-major, lane-dense)
#   p_ref : (Ci,  tm, 128) VMEM  phi(g) already upsampled (bias NOT yet added)
#   o_ref : (Cin, tm, 128) VMEM  gated output
# Weights/biases live in SMEM; the tiny channel contractions (K<=4, N<=2) are unrolled
# scalar-broadcast FMAs on the VPU over dense (tm, 128) slabs -- no MXU, no 1-lane tiles.
# ----------------------------------------------------------------------------
def attn_gate_kernel(x_ref, p_ref, tw_ref, pb_ref, qw_ref, qb_ref, o_ref):
    cin = x_ref.shape[0]
    ci = p_ref.shape[0]
    psi = jnp.zeros(x_ref.shape[1:], jnp.float32) + qb_ref[0]        # (tm, 128)
    for c in range(ci):                                              # Ci tiny -> unrolled
        acc = p_ref[c].astype(jnp.float32) + pb_ref[c]               # (tm, 128)
        for k in range(cin):
            acc = acc + tw_ref[k, c] * x_ref[k].astype(jnp.float32)  # theta FMA
        psi = psi + qw_ref[c] * jnp.maximum(acc, 0.0)                # ReLU, psi FMA
    alpha = jax.nn.sigmoid(psi)                                      # (tm, 128) attention
    for k in range(cin):                                             # dense, unmasked vst
        o_ref[k] = (x_ref[k].astype(jnp.float32) * alpha).astype(o_ref.dtype)


# ----------------------------------------------------------------------------
# Tiling helpers
# ----------------------------------------------------------------------------
def _ceil_div(a, b):
    return -(-a // b)


def _round_up(a, m):
    return _ceil_div(a, m) * m


def _sublane(dtype):
    return {4: 8, 2: 16, 1: 32}.get(jnp.dtype(dtype).itemsize, 8)


def _pick_tiles(m, tile_pixels, batch, sub):
    """Pick (tm, n_tiles) along the M = HW/128 sublane-row axis."""
    tm_target = max(sub, tile_pixels // 128)
    min_tiles = 1 if batch > 1 else 2        # v7x megacore: >=2 programs when B == 1
    n_tiles = min(max(_ceil_div(m, tm_target), min_tiles), m)
    tm = _ceil_div(m, n_tiles)
    if tm >= m:
        tm = m                               # full extent: always a legal block dim
    else:
        tm = _round_up(tm, sub)              # (8/16, 128) block-shape constraint
        if tm >= m:
            tm = m
    n_tiles = _ceil_div(m, tm)               # last block may be ragged (Pallas pads it)
    return tm, n_tiles


# ----------------------------------------------------------------------------
# pallas_call wrapper (operates on lane-dense (B, C, M, 128) layouts)
# ----------------------------------------------------------------------------
def attention_gate_pallas(x4, p4, theta_w, phi_b, psi_w, psi_b, *,
                          tile_pixels=131072, buffer_count=2, alias_x=False):
    """x4: (B, Cin, M, 128) skip pixels; p4: (B, Ci, M, 128) upsampled phi(g) (no bias).
    Returns (B, Cin, M, 128) with dtype x4.dtype."""
    B, Cin, M, L = x4.shape
    Ci = p4.shape[1]
    assert L == 128 and p4.shape[0] == B and p4.shape[2] == M and p4.shape[3] == 128

    sub = max(_sublane(x4.dtype), _sublane(p4.dtype))
    tm, n_tiles = _pick_tiles(M, tile_pixels, B, sub)

    def stream_spec(nchan):
        shape = (pl.Squeezed(), nchan, tm, 128)
        imap = lambda b, i: (b, 0, i, 0)
        if buffer_count > 2:                 # optional deeper pipelining of streamed inputs
            return pl.BlockSpec(shape, imap, pipeline_mode=pl.Buffered(buffer_count))
        return pl.BlockSpec(shape, imap)

    smem = pl.BlockSpec(memory_space=pltpu.MemorySpace.SMEM)
    out_spec = pl.BlockSpec((pl.Squeezed(), Cin, tm, 128), lambda b, i: (b, 0, i, 0))

    # Explicit scoped-VMEM budget: multi-buffered input blocks + double-buffered output
    # block + margin (v5e scoped default ~16 MiB; sized well under v7x's 64 MiB physical).
    nbuf = max(2, buffer_count)
    blk = tm * 128
    est = (nbuf * Cin * blk * jnp.dtype(x4.dtype).itemsize
           + nbuf * Ci * blk * jnp.dtype(p4.dtype).itemsize
           + 2 * Cin * blk * jnp.dtype(x4.dtype).itemsize
           + (2 << 20))
    vmem_limit = max(int(est), 16 << 20)

    return pl.pallas_call(
        attn_gate_kernel,
        out_shape=jax.ShapeDtypeStruct((B, Cin, M, 128), x4.dtype),
        grid_spec=pltpu.PrefetchScalarGridSpec(
            num_scalar_prefetch=0,
            grid=(B, n_tiles),
            in_specs=[
                stream_spec(Cin),            # x block
                stream_spec(Ci),             # phi_up block
                smem,                        # theta weight (Cin, Ci)
                smem,                        # phi bias (Ci,)
                smem,                        # psi weight (Ci,)
                smem,                        # psi bias (1,)
            ],
            out_specs=out_spec,
        ),
        compiler_params=pltpu.CompilerParams(
            dimension_semantics=("parallel", "parallel"),
            vmem_limit_bytes=vmem_limit),
        # Only beneficial if the caller donates x; otherwise XLA inserts a defensive copy.
        input_output_aliases=({0: 0} if alias_x else {}),
    )(x4, p4, theta_w, phi_b, psi_w, psi_b)


# ----------------------------------------------------------------------------
# Glue: bilinear (align_corners=True) interpolation matrix + forward wrapper
# ----------------------------------------------------------------------------
def interp_matrix(out_size, in_size, dtype=jnp.float32):
    """A (out_size, in_size): y = A @ x is 1-D bilinear interpolation with
    align_corners=True (matches F.interpolate(..., mode='bilinear', align_corners=True))."""
    if in_size == 1:
        return jnp.ones((out_size, 1), dtype)
    if out_size == 1:
        m = jnp.zeros((1, in_size), dtype)
        return m.at[0, 0].set(1.0)
    coords = jnp.arange(out_size, dtype=jnp.float32) * (in_size - 1) / (out_size - 1)
    lo = jnp.floor(coords).astype(jnp.int32)
    hi = jnp.minimum(lo + 1, in_size - 1)
    w = coords - lo.astype(jnp.float32)
    rows = jnp.arange(out_size)
    m = jnp.zeros((out_size, in_size), dtype)
    m = m.at[rows, lo].add((1.0 - w).astype(dtype))
    m = m.at[rows, hi].add(w.astype(dtype))
    return m


def attention_gate_forward(x, g, params, *, tile_pixels=131072, buffer_count=2,
                           alias_x=False):
    """
    x: (B, Cin, H, W)  NCHW skip-connection features
    g: (B, Cg, Hg, Wg) NCHW gating features
    Returns (B, Cin, H, W); same semantics as the PyTorch AttentionGate.forward.
    """
    B, Cin, H, W = x.shape
    Hg, Wg = g.shape[2:]
    Ci = params["phi_w"].shape[1]

    # phi at the small Hg x Wg resolution (bias deferred to the kernel), then upsample
    # only the Ci-channel result.  phi and the linear upsample commute exactly because
    # the bias is added afterwards, in-kernel.
    phi_small = jnp.einsum("bcij,ck->bkij", g, params["phi_w"])       # (B, Ci, Hg, Wg)
    Ah = interp_matrix(H, Hg, x.dtype)                                # (H, Hg)
    Aw = interp_matrix(W, Wg, x.dtype)                                # (W, Wg)
    phi_up = jnp.einsum("hi,bkij,wj->bkhw", Ah, phi_small, Aw)        # (B, Ci, H, W)

    # Lane-dense layout: fold pixels into (M, 128).  Reshapes are free (contiguous);
    # padding only happens when HW is not a multiple of 128.
    HW = H * W
    HW_pad = _round_up(HW, 128)
    x3 = x.reshape(B, Cin, HW)
    p3 = phi_up.reshape(B, Ci, HW)
    if HW_pad != HW:
        x3 = jnp.pad(x3, ((0, 0), (0, 0), (0, HW_pad - HW)))
        p3 = jnp.pad(p3, ((0, 0), (0, 0), (0, HW_pad - HW)))
    M = HW_pad // 128
    x4 = x3.reshape(B, Cin, M, 128)
    p4 = p3.reshape(B, Ci, M, 128)

    out4 = attention_gate_pallas(
        x4, p4,
        params["theta_w"], params["phi_b"], params["psi_w"], params["psi_b"],
        tile_pixels=tile_pixels, buffer_count=buffer_count, alias_x=alias_x)

    out3 = out4.reshape(B, Cin, HW_pad)
    if HW_pad != HW:
        out3 = out3[:, :, :HW]
    return out3.reshape(B, Cin, H, W)


# Pure-JAX reference (original unfused math) for the correctness check.
def attention_gate_ref(x, g, params):
    H, W = x.shape[2:]
    Hg, Wg = g.shape[2:]
    Ah = interp_matrix(H, Hg, x.dtype)
    Aw = interp_matrix(W, Wg, x.dtype)
    g_up = jnp.einsum("hi,bcij,wj->bchw", Ah, g, Aw)
    theta = jnp.einsum("bchw,ck->bkhw", x, params["theta_w"])
    phi = jnp.einsum("bchw,ck->bkhw", g_up, params["phi_w"]) \
        + params["phi_b"].reshape(1, -1, 1, 1)
    f = jnp.maximum(theta + phi, 0.0)
    psi = jnp.einsum("bkhw,k->bhw", f, params["psi_w"])[:, None] \
        + params["psi_b"].reshape(1, 1, 1, 1)
    return x * jax.nn.sigmoid(psi)


if __name__ == "__main__":
    key = jax.random.PRNGKey(0)
    k_x, k_g, k_tw, k_pw, k_pb, k_qw, k_qb = jax.random.split(key, 7)

    # Shapes consistent with the module: in_channels=4, gating_channels=8,
    # inter_channels = in_channels // 2 = 2; g has smaller spatial size and is upsampled.
    B, Cin, H, W = 2, 4, 16, 16
    Cg, Hg, Wg = 8, 8, 8
    Ci = Cin // 2

    x = jax.random.normal(k_x, (B, Cin, H, W), jnp.float32)
    g = jax.random.normal(k_g, (B, Cg, Hg, Wg), jnp.float32)

    # Deterministic synthetic parameters (1x1 conv weights as channel matrices).
    params = {
        "theta_w": jax.random.normal(k_tw, (Cin, Ci), jnp.float32) * 0.5,   # theta: no bias
        "phi_w":   jax.random.normal(k_pw, (Cg, Ci), jnp.float32) * 0.5,
        "phi_b":   jax.random.normal(k_pb, (Ci,), jnp.float32) * 0.1,
        "psi_w":   jax.random.normal(k_qw, (Ci,), jnp.float32) * 0.5,
        "psi_b":   jax.random.normal(k_qb, (1,), jnp.float32) * 0.1,
    }

    out = jax.jit(attention_gate_forward)(x, g, params)
    out = jax.block_until_ready(out)

    ref = attention_gate_ref(x, g, params)
    assert out.shape == (B, Cin, H, W)
    assert jnp.allclose(out, ref, atol=1e-4, rtol=1e-4), "mismatch vs reference"

    print("KERNEL_OK")
</pallas_src>

<mosaic_0001>
module attributes {stable_mosaic.version = 11 : i64} {
  func.func private @main(%arg0: i32) attributes {dimension_semantics = [#tpu.dimension_semantics<core_parallel>], iteration_bounds = array<i64: 2>, tpu.core_type = #tpu.core_type<sc_scalar_subcore>, window_params = []} {
    return
  }
}

module attributes {stable_mosaic.version = 11 : i64} {
  func.func private @main(%arg0: i32) attributes {dimension_semantics = [#tpu.dimension_semantics<core_parallel>], iteration_bounds = array<i64: 2>, tpu.core_type = #tpu.core_type<sc_scalar_subcore>, window_params = []} {
    return
  }
}

module attributes {stable_mosaic.version = 11 : i64} {
  func.func @attn_gate_kernel(%arg0: i32, %arg1: i32, %arg2: memref<1x4x2x128xf32, #tpu.memory_space<vmem>>, %arg3: memref<1x2x2x128xf32, #tpu.memory_space<vmem>>, %arg4: memref<4x2xf32, #tpu.memory_space<smem>>, %arg5: memref<2xf32, #tpu.memory_space<smem>>, %arg6: memref<2xf32, #tpu.memory_space<smem>>, %arg7: memref<1xf32, #tpu.memory_space<smem>>, %arg8: memref<1x4x2x128xf32, #tpu.memory_space<vmem>>) attributes {dimension_semantics = [#tpu.dimension_semantics<parallel>, #tpu.dimension_semantics<parallel>], iteration_bounds = array<i64: 2, 1>, scalar_prefetch = 0 : i64, scratch_operands = 0 : i64, tpu.core_type = #tpu.core_type<tc>, window_params = [{transform_indices = @transform_0, window_bounds = array<i64: 1, 4, 2, 128>}, {transform_indices = @transform_1, window_bounds = array<i64: 1, 2, 2, 128>}, {transform_indices = @transform_2, window_bounds = array<i64: 4, 2>}, {transform_indices = @transform_3, window_bounds = array<i64: 2>}, {transform_indices = @transform_4, window_bounds = array<i64: 2>}, {transform_indices = @transform_5, window_bounds = array<i64: 1>}, {transform_indices = @transform_6, window_bounds = array<i64: 1, 4, 2, 128>}]} {
    %cst = arith.constant 0.000000e+00 : f32
    %0 = vector.broadcast %cst : f32 to vector<2x128xf32>
    %c0 = arith.constant 0 : index
    %1 = memref.load %arg7[%c0] : memref<1xf32, #tpu.memory_space<smem>>
    %2 = vector.broadcast %1 : f32 to vector<2x128xf32>
    %3 = arith.addf %0, %2 : vector<2x128xf32>
    %c0_0 = arith.constant 0 : index
    %c0_1 = arith.constant 0 : index
    %c0_2 = arith.constant 0 : index
    %c0_3 = arith.constant 0 : index
    %4 = vector.load %arg3[%c0_0, %c0_1, %c0_2, %c0_3] : memref<1x2x2x128xf32, #tpu.memory_space<vmem>>, vector<1x1x2x128xf32>
    %5 = vector.shape_cast %4 : vector<1x1x2x128xf32> to vector<2x128xf32>
    %c0_4 = arith.constant 0 : index
    %6 = memref.load %arg5[%c0_4] : memref<2xf32, #tpu.memory_space<smem>>
    %7 = vector.broadcast %6 : f32 to vector<2x128xf32>
    %8 = arith.addf %5, %7 : vector<2x128xf32>
    %c0_5 = arith.constant 0 : index
    %c0_6 = arith.constant 0 : index
    %9 = memref.load %arg4[%c0_5, %c0_6] : memref<4x2xf32, #tpu.memory_space<smem>>
    %c0_7 = arith.constant 0 : index
    %c0_8 = arith.constant 0 : index
    %c0_9 = arith.constant 0 : index
    %c0_10 = arith.constant 0 : index
    %10 = vector.load %arg2[%c0_7, %c0_8, %c0_9, %c0_10] : memref<1x4x2x128xf32, #tpu.memory_space<vmem>>, vector<1x1x2x128xf32>
    %11 = vector.shape_cast %10 : vector<1x1x2x128xf32> to vector<2x128xf32>
    %12 = vector.broadcast %9 : f32 to vector<2x128xf32>
    %13 = arith.mulf %12, %11 : vector<2x128xf32>
    %14 = arith.addf %8, %13 : vector<2x128xf32>
    %c1 = arith.constant 1 : index
    %c0_11 = arith.constant 0 : index
    %15 = memref.load %arg4[%c1, %c0_11] : memref<4x2xf32, #tpu.memory_space<smem>>
    %c0_12 = arith.constant 0 : index
    %c1_13 = arith.constant 1 : index
    %c0_14 = arith.constant 0 : index
    %c0_15 = arith.constant 0 : index
    %16 = vector.load %arg2[%c0_12, %c1_13, %c0_14, %c0_15] : memref<1x4x2x128xf32, #tpu.memory_space<vmem>>, vector<1x1x2x128xf32>
    %17 = vector.shape_cast %16 : vector<1x1x2x128xf32> to vector<2x128xf32>
    %18 = vector.broadcast %15 : f32 to vector<2x128xf32>
    %19 = arith.mulf %18, %17 : vector<2x128xf32>
    %20 = arith.addf %14, %19 : vector<2x128xf32>
    %c2 = arith.constant 2 : index
    %c0_16 = arith.constant 0 : index
    %21 = memref.load %arg4[%c2, %c0_16] : memref<4x2xf32, #tpu.memory_space<smem>>
    %c0_17 = arith.constant 0 : index
    %c2_18 = arith.constant 2 : index
    %c0_19 = arith.constant 0 : index
    %c0_20 = arith.constant 0 : index
    %22 = vector.load %arg2[%c0_17, %c2_18, %c0_19, %c0_20] : memref<1x4x2x128xf32, #tpu.memory_space<vmem>>, vector<1x1x2x128xf32>
    %23 = vector.shape_cast %22 : vector<1x1x2x128xf32> to vector<2x128xf32>
    %24 = vector.broadcast %21 : f32 to vector<2x128xf32>
    %25 = arith.mulf %24, %23 : vector<2x128xf32>
    %26 = arith.addf %20, %25 : vector<2x128xf32>
    %c3 = arith.constant 3 : index
    %c0_21 = arith.constant 0 : index
    %27 = memref.load %arg4[%c3, %c0_21] : memref<4x2xf32, #tpu.memory_space<smem>>
    %c0_22 = arith.constant 0 : index
    %c3_23 = arith.constant 3 : index
    %c0_24 = arith.constant 0 : index
    %c0_25 = arith.constant 0 : index
    %28 = vector.load %arg2[%c0_22, %c3_23, %c0_24, %c0_25] : memref<1x4x2x128xf32, #tpu.memory_space<vmem>>, vector<1x1x2x128xf32>
    %29 = vector.shape_cast %28 : vector<1x1x2x128xf32> to vector<2x128xf32>
    %30 = vector.broadcast %27 : f32 to vector<2x128xf32>
    %31 = arith.mulf %30, %29 : vector<2x128xf32>
    %32 = arith.addf %26, %31 : vector<2x128xf32>
    %c0_26 = arith.constant 0 : index
    %33 = memref.load %arg6[%c0_26] : memref<2xf32, #tpu.memory_space<smem>>
    %cst_27 = arith.constant 0.000000e+00 : f32
    %34 = vector.broadcast %cst_27 : f32 to vector<2x128xf32>
    %35 = arith.maximumf %32, %34 : vector<2x128xf32>
    %36 = vector.broadcast %33 : f32 to vector<2x128xf32>
    %37 = arith.mulf %36, %35 : vector<2x128xf32>
    %38 = arith.addf %3, %37 : vector<2x128xf32>
    %c0_28 = arith.constant 0 : index
    %c1_29 = arith.constant 1 : index
    %c0_30 = arith.constant 0 : index
    %c0_31 = arith.constant 0 : index
    %39 = vector.load %arg3[%c0_28, %c1_29, %c0_30, %c0_31] : memref<1x2x2x128xf32, #tpu.memory_space<vmem>>, vector<1x1x2x128xf32>
    %40 = vector.shape_cast %39 : vector<1x1x2x128xf32> to vector<2x128xf32>
    %c1_32 = arith.constant 1 : index
    %41 = memref.load %arg5[%c1_32] : memref<2xf32, #tpu.memory_space<smem>>
    %42 = vector.broadcast %41 : f32 to vector<2x128xf32>
    %43 = arith.addf %40, %42 : vector<2x128xf32>
    %c0_33 = arith.constant 0 : index
    %c1_34 = arith.constant 1 : index
    %44 = memref.load %arg4[%c0_33, %c1_34] : memref<4x2xf32, #tpu.memory_space<smem>>
    %c0_35 = arith.constant 0 : index
    %c0_36 = arith.constant 0 : index
    %c0_37 = arith.constant 0 : index
    %c0_38 = arith.constant 0 : index
    %45 = vector.load %arg2[%c0_35, %c0_36, %c0_37, %c0_38] : memref<1x4x2x128xf32, #tpu.memory_space<vmem>>, vector<1x1x2x128xf32>
    %46 = vector.shape_cast %45 : vector<1x1x2x128xf32> to vector<2x128xf32>
    %47 = vector.broadcast %44 : f32 to vector<2x128xf32>
    %48 = arith.mulf %47, %46 : vector<2x128xf32>
    %49 = arith.addf %43, %48 : vector<2x128xf32>
    %c1_39 = arith.constant 1 : index
    %c1_40 = arith.constant 1 : index
    %50 = memref.load %arg4[%c1_39, %c1_40] : memref<4x2xf32, #tpu.memory_space<smem>>
    %c0_41 = arith.constant 0 : index
    %c1_42 = arith.constant 1 : index
    %c0_43 = arith.constant 0 : index
    %c0_44 = arith.constant 0 : index
    %51 = vector.load %arg2[%c0_41, %c1_42, %c0_43, %c0_44] : memref<1x4x2x128xf32, #tpu.memory_space<vmem>>, vector<1x1x2x128xf32>
    %52 = vector.shape_cast %51 : vector<1x1x2x128xf32> to vector<2x128xf32>
    %53 = vector.broadcast %50 : f32 to vector<2x128xf32>
    %54 = arith.mulf %53, %52 : vector<2x128xf32>
    %55 = arith.addf %49, %54 : vector<2x128xf32>
    %c2_45 = arith.constant 2 : index
    %c1_46 = arith.constant 1 : index
    %56 = memref.load %arg4[%c2_45, %c1_46] : memref<4x2xf32, #tpu.memory_space<smem>>
    %c0_47 = arith.constant 0 : index
    %c2_48 = arith.constant 2 : index
    %c0_49 = arith.constant 0 : index
    %c0_50 = arith.constant 0 : index
    %57 = vector.load %arg2[%c0_47, %c2_48, %c0_49, %c0_50] : memref<1x4x2x128xf32, #tpu.memory_space<vmem>>, vector<1x1x2x128xf32>
    %58 = vector.shape_cast %57 : vector<1x1x2x128xf32> to vector<2x128xf32>
    %59 = vector.broadcast %56 : f32 to vector<2x128xf32>
    %60 = arith.mulf %59, %58 : vector<2x128xf32>
    %61 = arith.addf %55, %60 : vector<2x128xf32>
    %c3_51 = arith.constant 3 : index
    %c1_52 = arith.constant 1 : index
    %62 = memref.load %arg4[%c3_51, %c1_52] : memref<4x2xf32, #tpu.memory_space<smem>>
    %c0_53 = arith.constant 0 : index
    %c3_54 = arith.constant 3 : index
    %c0_55 = arith.constant 0 : index
    %c0_56 = arith.constant 0 : index
    %63 = vector.load %arg2[%c0_53, %c3_54, %c0_55, %c0_56] : memref<1x4x2x128xf32, #tpu.memory_space<vmem>>, vector<1x1x2x128xf32>
    %64 = vector.shape_cast %63 : vector<1x1x2x128xf32> to vector<2x128xf32>
    %65 = vector.broadcast %62 : f32 to vector<2x128xf32>
    %66 = arith.mulf %65, %64 : vector<2x128xf32>
    %67 = arith.addf %61, %66 : vector<2x128xf32>
    %c1_57 = arith.constant 1 : index
    %68 = memref.load %arg6[%c1_57] : memref<2xf32, #tpu.memory_space<smem>>
    %cst_58 = arith.constant 0.000000e+00 : f32
    %69 = vector.broadcast %cst_58 : f32 to vector<2x128xf32>
    %70 = arith.maximumf %67, %69 : vector<2x128xf32>
    %71 = vector.broadcast %68 : f32 to vector<2x128xf32>
    %72 = arith.mulf %71, %70 : vector<2x128xf32>
    %73 = arith.addf %38, %72 : vector<2x128xf32>
    %74 = arith.negf %73 : vector<2x128xf32>
    %75 = math.exp %74 : vector<2x128xf32>
    %cst_59 = arith.constant 1.000000e+00 : f32
    %76 = vector.broadcast %cst_59 : f32 to vector<2x128xf32>
    %77 = arith.addf %76, %75 : vector<2x128xf32>
    %78 = arith.divf %76, %77 : vector<2x128xf32>
    %c0_60 = arith.constant 0 : index
    %c0_61 = arith.constant 0 : index
    %c0_62 = arith.constant 0 : index
    %c0_63 = arith.constant 0 : index
    %79 = vector.load %arg2[%c0_60, %c0_61, %c0_62, %c0_63] : memref<1x4x2x128xf32, #tpu.memory_space<vmem>>, vector<1x1x2x128xf32>
    %80 = vector.shape_cast %79 : vector<1x1x2x128xf32> to vector<2x128xf32>
    %81 = arith.mulf %80, %78 : vector<2x128xf32>
    %c0_64 = arith.constant 0 : index
    %c0_65 = arith.constant 0 : index
    %c0_66 = arith.constant 0 : index
    %c0_67 = arith.constant 0 : index
    %82 = vector.load %arg8[%c0_64, %c0_65, %c0_66, %c0_67] : memref<1x4x2x128xf32, #tpu.memory_space<vmem>>, vector<1x1x2x128xf32>
    %83 = vector.shape_cast %82 : vector<1x1x2x128xf32> to vector<2x128xf32>
    %84 = vector.shape_cast %81 : vector<2x128xf32> to vector<1x1x2x128xf32>
    tpu.vector_store %arg8[%c0_64, %c0_65, %c0_66, %c0_67], %84 {strides = array<i32>} : memref<1x4x2x128xf32, #tpu.memory_space<vmem>>, vector<1x1x2x128xf32>,
    %c0_68 = arith.constant 0 : index
    %c1_69 = arith.constant 1 : index
    %c0_70 = arith.constant 0 : index
    %c0_71 = arith.constant 0 : index
    %85 = vector.load %arg2[%c0_68, %c1_69, %c0_70, %c0_71] : memref<1x4x2x128xf32, #tpu.memory_space<vmem>>, vector<1x1x2x128xf32>
    %86 = vector.shape_cast %85 : vector<1x1x2x128xf32> to vector<2x128xf32>
    %87 = arith.mulf %86, %78 : vector<2x128xf32>
    %c0_72 = arith.constant 0 : index
    %c1_73 = arith.constant 1 : index
    %c0_74 = arith.constant 0 : index
    %c0_75 = arith.constant 0 : index
    %88 = vector.load %arg8[%c0_72, %c1_73, %c0_74, %c0_75] : memref<1x4x2x128xf32, #tpu.memory_space<vmem>>, vector<1x1x2x128xf32>
    %89 = vector.shape_cast %88 : vector<1x1x2x128xf32> to vector<2x128xf32>
    %90 = vector.shape_cast %87 : vector<2x128xf32> to vector<1x1x2x128xf32>
    tpu.vector_store %arg8[%c0_72, %c1_73, %c0_74, %c0_75], %90 {strides = array<i32>} : memref<1x4x2x128xf32, #tpu.memory_space<vmem>>, vector<1x1x2x128xf32>,
    %c0_76 = arith.constant 0 : index
    %c2_77 = arith.constant 2 : index
    %c0_78 = arith.constant 0 : index
    %c0_79 = arith.constant 0 : index
    %91 = vector.load %arg2[%c0_76, %c2_77, %c0_78, %c0_79] : memref<1x4x2x128xf32, #tpu.memory_space<vmem>>, vector<1x1x2x128xf32>
    %92 = vector.shape_cast %91 : vector<1x1x2x128xf32> to vector<2x128xf32>
    %93 = arith.mulf %92, %78 : vector<2x128xf32>
    %c0_80 = arith.constant 0 : index
    %c2_81 = arith.constant 2 : index
    %c0_82 = arith.constant 0 : index
    %c0_83 = arith.constant 0 : index
    %94 = vector.load %arg8[%c0_80, %c2_81, %c0_82, %c0_83] : memref<1x4x2x128xf32, #tpu.memory_space<vmem>>, vector<1x1x2x128xf32>
    %95 = vector.shape_cast %94 : vector<1x1x2x128xf32> to vector<2x128xf32>
    %96 = vector.shape_cast %93 : vector<2x128xf32> to vector<1x1x2x128xf32>
    tpu.vector_store %arg8[%c0_80, %c2_81, %c0_82, %c0_83], %96 {strides = array<i32>} : memref<1x4x2x128xf32, #tpu.memory_space<vmem>>, vector<1x1x2x128xf32>,
    %c0_84 = arith.constant 0 : index
    %c3_85 = arith.constant 3 : index
    %c0_86 = arith.constant 0 : index
    %c0_87 = arith.constant 0 : index
    %97 = vector.load %arg2[%c0_84, %c3_85, %c0_86, %c0_87] : memref<1x4x2x128xf32, #tpu.memory_space<vmem>>, vector<1x1x2x128xf32>
    %98 = vector.shape_cast %97 : vector<1x1x2x128xf32> to vector<2x128xf32>
    %99 = arith.mulf %98, %78 : vector<2x128xf32>
    %c0_88 = arith.constant 0 : index
    %c3_89 = arith.constant 3 : index
    %c0_90 = arith.constant 0 : index
    %c0_91 = arith.constant 0 : index
    %100 = vector.load %arg8[%c0_88, %c3_89, %c0_90, %c0_91] : memref<1x4x2x128xf32, #tpu.memory_space<vmem>>, vector<1x1x2x128xf32>
    %101 = vector.shape_cast %100 : vector<1x1x2x128xf32> to vector<2x128xf32>
    %102 = vector.shape_cast %99 : vector<2x128xf32> to vector<1x1x2x128xf32>
    tpu.vector_store %arg8[%c0_88, %c3_89, %c0_90, %c0_91], %102 {strides = array<i32>} : memref<1x4x2x128xf32, #tpu.memory_space<vmem>>, vector<1x1x2x128xf32>,
    return
  }
  func.func @transform_0(%arg0: i32, %arg1: i32) -> (i32, i32, i32, i32) {
    %c0_i32 = arith.constant 0 : i32
    %c0_i32_0 = arith.constant 0 : i32
    %c0_i32_1 = arith.constant 0 : i32
    return %arg0, %c0_i32, %arg1, %c0_i32_0 : i32, i32, i32, i32
  }
  func.func @transform_1(%arg0: i32, %arg1: i32) -> (i32, i32, i32, i32) {
    %c0_i32 = arith.constant 0 : i32
    %c0_i32_0 = arith.constant 0 : i32
    %c0_i32_1 = arith.constant 0 : i32
    return %arg0, %c0_i32, %arg1, %c0_i32_0 : i32, i32, i32, i32
  }
  func.func @transform_2(%arg0: i32, %arg1: i32) -> (i32, i32) {
    %c0_i32 = arith.constant 0 : i32
    %c0_i32_0 = arith.constant 0 : i32
    %c0_i32_1 = arith.constant 0 : i32
    return %c0_i32, %c0_i32_0 : i32, i32
  }
  func.func @transform_3(%arg0: i32, %arg1: i32) -> i32 {
    %c0_i32 = arith.constant 0 : i32
    %c0_i32_0 = arith.constant 0 : i32
    return %c0_i32 : i32
  }
  func.func @transform_4(%arg0: i32, %arg1: i32) -> i32 {
    %c0_i32 = arith.constant 0 : i32
    %c0_i32_0 = arith.constant 0 : i32
    return %c0_i32 : i32
  }
  func.func @transform_5(%arg0: i32, %arg1: i32) -> i32 {
    %c0_i32 = arith.constant 0 : i32
    %c0_i32_0 = arith.constant 0 : i32
    return %c0_i32 : i32
  }
  func.func @transform_6(%arg0: i32, %arg1: i32) -> (i32, i32, i32, i32) {
    %c0_i32 = arith.constant 0 : i32
    %c0_i32_0 = arith.constant 0 : i32
    %c0_i32_1 = arith.constant 0 : i32
    return %arg0, %c0_i32, %arg1, %c0_i32_0 : i32, i32, i32, i32
  }
}

</mosaic_0001>

<llo_original>
// kernel: attention_gate_forward.1
$region0: #{attention_gate_forward.1}
  #allocation0 [shape = 'u32[]', space=smem, size = 0x4, offset = 0x4, fixed_abs, tag = 'smem constant byte address 0x4 - core index']
  #allocation1 [shape = 'u32[144,128]{1,0:T(1,128)}', space=vmem, size = 0x12000, scoped, tag = 'internal scratch']
  #allocation2 [shape = 'f32[1]{0:T(128)S(6)}', space=smem, size = 0x200, scoped, tag = 'scoped memory for attention_gate_forward.1']
  %s0 = inlined_call_operand.vmem [shape: f32[2,4,2,128], index: 0, kind: input, shape index: {}]
  %s1 = inlined_call_operand.vmem [shape: f32[2,2,2,128], index: 1, kind: input, shape index: {}]
  %s2 = inlined_call_operand.vmem [shape: f32[4,2], index: 2, kind: input, shape index: {}]
  %s3 = inlined_call_operand.vmem [shape: f32[2], index: 3, kind: input, shape index: {}]
  %s4 = inlined_call_operand.vmem [shape: f32[2], index: 4, kind: input, shape index: {}]
  %s5 = inlined_call_operand.<no memory space> [shape: f32[1], index: 5, kind: input, shape index: {}]
  %s6 = inlined_call_operand.vmem [shape: f32[2,4,2,128], index: 6, kind: output, shape index: {}]
  %s7 = sld [smem:[#allocation0]]
  $region69: #{attention_gate_forward.1} parent=0
    _
  %s9 = ssub.s32 1, %s7
  %s10 = scalar_select 0, %s9, %s7
  %11 = sst [smem:[#allocation2]] %s5
  $region1: #{attention_gate_forward.1} parent=0
    #allocation3 [shape = 'u8[2048]{0}', space=smem, size = 0x800, scoped, tag = 'input window, operand 2, single buffered']
    #allocation4 [shape = 's32[2]{0}', space=sflag, size = 0x8, scoped, tag = 'scoped memory for attention_gate_forward.1']
    #allocation5 [shape = 'u8[512]{0}', space=smem, size = 0x200, scoped, tag = 'input window, operand 3, single buffered']
    #allocation6 [shape = 's32[1]{0}', space=sflag, size = 0x4, scoped, tag = 'scoped memory for attention_gate_forward.1']
    #allocation7 [shape = 'u8[512]{0}', space=smem, size = 0x200, scoped, tag = 'input window, operand 4, single buffered']
    %12 = vsyncpa [#allocation4], 0
    %13 = vsyncpa [#allocation6], 0
    loop: start=0, step=1, limit=4
    $region2: #{attention_gate_forward.1} parent=1 // loop_pre_header
      _
    $region3: #{attention_gate_forward.1} parent=1 // loop_header
      %s15 = sphi 0, %s19
      %p16 = scmp.ge.s32.totalorder %s15, 4
      %s22 = sphi 0, %s34
      %s23 = sphi 0, %s30
      %s24 = sphi 0, %s22
      %s25 = sphi 0, %s23
      %s26 = sphi 0, %s24
      %s27 = sphi 0, %s25
      %s39 = sphi 0, %s41
      %s42 = sphi 0, %s39
      %s43 = sphi 0, %s42
      %s59 = sphi 0, %s43
      %s67 = sphi 0, %s69
      %s70 = sphi 0, %s67
      %s71 = sphi 0, %s70
      %s87 = sphi 0, %s71
      %s91 = sphi 0, %s91
      %s93 = sphi 0, %s91
      %s94 = sphi 0, %s93
      %s108 = sphi 0, %s94
      %s112 = sphi 0, %s112
      %s114 = sphi 0, %s112
      %s115 = sphi 0, %s114
      %s129 = sphi 0, %s115
      %s133 = sphi 0, %s133
      %s135 = sphi 0, %s133
      %s136 = sphi 0, %s135
      %s150 = sphi 0, %s136
      %s154 = sphi 0, %s154
      %s156 = sphi 0, %s154
      %s157 = sphi 0, %s156
      %s171 = sphi 0, %s157
      %s179 = sphi 0, %s181
      %s182 = sphi 0, %s179
      %s183 = sphi 0, %s182
      %s199 = sphi 0, %s183
    $region4: #{attention_gate_forward.1} parent=1 // loop_header_branch
      %18 = sbr.rel (%p16) target = $region8
    $region5: #{attention_gate_forward.1} parent=1 // loop_body
      %s20 = ssub.s32 %s15, 1
      %s21 = ssub.s32 %s15, 2
      %s28 = sadd.s32 1, %s23
      %p29 = scmp.ge.s32.totalorder %s28, 1
      %s30 = scalar_select %p29, 0, %s28
      %s31 = sadd.s32 1, %s22
      %s32 = scalar_select %p29, %s31, %s22
      %p33 = scmp.ge.s32.totalorder %s32, 2
      %s34 = scalar_select %p33, 0, %s32
      %s35 = ssub.s32 %s22, %s34
      %s36 = ssub.s32 %s23, %s30
      %s37 = sor.u32 %s35, %s36
      %p38 = scmp.eq.s32.totalorder %s37, 0
      %s40 = sadd.s32 %s39, 1
      %s41 = scalar_select %p38, %s39, %s40
      %p44 = pneg %p38
      %p45 = scmp.eq.s32.totalorder %s15, 1
      %p46 = por %p44, %p45
      %p47 = scmp.ne.s32.totalorder %s39, %s42
      %p48 = scmp.eq.s32.totalorder %s15, 0
      %p49 = por %p47, %p48
      %p50 = scmp.ne.s32.totalorder %s39, %s42
      %p51 = scmp.eq.s32.totalorder %s20, 1
      %p52 = por %p50, %p51
      %p53 = scmp.ne.s32.totalorder %s42, %s43
      %p54 = scmp.eq.s32.totalorder %s20, 0
      %p55 = por %p53, %p54
      %p56 = scmp.ne.s32.totalorder %s42, %s43
      %p57 = scmp.eq.s32.totalorder %s21, 1
      %p58 = por %p56, %p57
      %p60 = scmp.ne.s32.totalorder %s43, %s59
      %p61 = scmp.eq.s32.totalorder %s21, 0
      %p62 = por %p60, %p61
      %s63 = ssub.s32 %s22, %s34
      %s64 = ssub.s32 %s23, %s30
      %s65 = sor.u32 %s63, %s64
      %p66 = scmp.eq.s32.totalorder %s65, 0
      %s68 = sadd.s32 %s67, 1
      %s69 = scalar_select %p66, %s67, %s68
      %p72 = pneg %p66
      %p73 = scmp.eq.s32.totalorder %s15, 1
      %p74 = por %p72, %p73
      %p75 = scmp.ne.s32.totalorder %s67, %s70
      %p76 = scmp.eq.s32.totalorder %s15, 0
      %p77 = por %p75, %p76
      %p78 = scmp.ne.s32.totalorder %s67, %s70
      %p79 = scmp.eq.s32.totalorder %s20, 1
      %p80 = por %p78, %p79
      %p81 = scmp.ne.s32.totalorder %s70, %s71
      %p82 = scmp.eq.s32.totalorder %s20, 0
      %p83 = por %p81, %p82
      %p84 = scmp.ne.s32.totalorder %s70, %s71
      %p85 = scmp.eq.s32.totalorder %s21, 1
      %p86 = por %p84, %p85
      %p88 = scmp.ne.s32.totalorder %s71, %s87
      %p89 = scmp.eq.s32.totalorder %s21, 0
      %p90 = por %p88, %p89
      %s92 = sadd.s32 %s91, 1
      %p95 = scmp.eq.s32.totalorder %s15, 1
      %p96 = scmp.ne.s32.totalorder %s91, %s93
      %p97 = scmp.eq.s32.totalorder %s15, 0
      %p98 = por %p96, %p97
      %p99 = scmp.ne.s32.totalorder %s91, %s93
      %p100 = scmp.eq.s32.totalorder %s20, 1
      %p101 = por %p99, %p100
      %p102 = scmp.ne.s32.totalorder %s93, %s94
      %p103 = scmp.eq.s32.totalorder %s20, 0
      %p104 = por %p102, %p103
      %p105 = scmp.ne.s32.totalorder %s93, %s94
      %p106 = scmp.eq.s32.totalorder %s21, 1
      %p107 = por %p105, %p106
      %p109 = scmp.ne.s32.totalorder %s94, %s108
      %p110 = scmp.eq.s32.totalorder %s21, 0
      %p111 = por %p109, %p110
      %s113 = sadd.s32 %s112, 1
      %p116 = scmp.eq.s32.totalorder %s15, 1
      %p117 = scmp.ne.s32.totalorder %s112, %s114
      %p118 = scmp.eq.s32.totalorder %s15, 0
      %p119 = por %p117, %p118
      %p120 = scmp.ne.s32.totalorder %s112, %s114
      %p121 = scmp.eq.s32.totalorder %s20, 1
      %p122 = por %p120, %p121
      %p123 = scmp.ne.s32.totalorder %s114, %s115
      %p124 = scmp.eq.s32.totalorder %s20, 0
      %p125 = por %p123, %p124
      %p126 = scmp.ne.s32.totalorder %s114, %s115
      %p127 = scmp.eq.s32.totalorder %s21, 1
      %p128 = por %p126, %p127
      %p130 = scmp.ne.s32.totalorder %s115, %s129
      %p131 = scmp.eq.s32.totalorder %s21, 0
      %p132 = por %p130, %p131
      %s134 = sadd.s32 %s133, 1
      %p137 = scmp.eq.s32.totalorder %s15, 1
      %p138 = scmp.ne.s32.totalorder %s133, %s135
      %p139 = scmp.eq.s32.totalorder %s15, 0
      %p140 = por %p138, %p139
      %p141 = scmp.ne.s32.totalorder %s133, %s135
      %p142 = scmp.eq.s32.totalorder %s20, 1
      %p143 = por %p141, %p142
      %p144 = scmp.ne.s32.totalorder %s135, %s136
      %p145 = scmp.eq.s32.totalorder %s20, 0
      %p146 = por %p144, %p145
      %p147 = scmp.ne.s32.totalorder %s135, %s136
      %p148 = scmp.eq.s32.totalorder %s21, 1
      %p149 = por %p147, %p148
      %p151 = scmp.ne.s32.totalorder %s136, %s150
      %p152 = scmp.eq.s32.totalorder %s21, 0
      %p153 = por %p151, %p152
      %s155 = sadd.s32 %s154, 1
      %p158 = scmp.eq.s32.totalorder %s15, 1
      %p159 = scmp.ne.s32.totalorder %s154, %s156
      %p160 = scmp.eq.s32.totalorder %s15, 0
      %p161 = por %p159, %p160
      %p162 = scmp.ne.s32.totalorder %s154, %s156
      %p163 = scmp.eq.s32.totalorder %s20, 1
      %p164 = por %p162, %p163
      %p165 = scmp.ne.s32.totalorder %s156, %s157
      %p166 = scmp.eq.s32.totalorder %s20, 0
      %p167 = por %p165, %p166
      %p168 = scmp.ne.s32.totalorder %s156, %s157
      %p169 = scmp.eq.s32.totalorder %s21, 1
      %p170 = por %p168, %p169
      %p172 = scmp.ne.s32.totalorder %s157, %s171
      %p173 = scmp.eq.s32.totalorder %s21, 0
      %p174 = por %p172, %p173
      %s175 = ssub.s32 %s22, %s34
      %s176 = ssub.s32 %s23, %s30
      %s177 = sor.u32 %s175, %s176
      %p178 = scmp.eq.s32.totalorder %s177, 0
      %s180 = sadd.s32 %s179, 1
      %s181 = scalar_select %p178, %s179, %s180
      %p184 = pneg %p178
      %p185 = scmp.eq.s32.totalorder %s15, 1
      %p186 = por %p184, %p185
      %p187 = scmp.ne.s32.totalorder %s179, %s182
      %p188 = scmp.eq.s32.totalorder %s15, 0
      %p189 = por %p187, %p188
      %p190 = scmp.ne.s32.totalorder %s179, %s182
      %p191 = scmp.eq.s32.totalorder %s20, 1
      %p192 = por %p190, %p191
      %p193 = scmp.ne.s32.totalorder %s182, %s183
      %p194 = scmp.eq.s32.totalorder %s20, 0
      %p195 = por %p193, %p194
      %p196 = scmp.ne.s32.totalorder %s182, %s183
      %p197 = scmp.eq.s32.totalorder %s21, 1
      %p198 = por %p196, %p197
      %p200 = scmp.ne.s32.totalorder %s183, %s199
      %p201 = scmp.eq.s32.totalorder %s21, 0
      %p202 = por %p200, %p201
      %p203 = scmp.le.s32.totalorder 1, %s15
      %p204 = scmp.lt.s32.totalorder %s15, 3
      %p205 = pnand %p203, %p204
      %p206 = pneg %p205
      // Predicated region
      $region9: #{attention_gate_forward.1} parent=5 // pred_check
        _
      $region10: #{attention_gate_forward.1} parent=5 // pred_check_branch
        %208 = sbr.rel (%p205) target = $region12
      $region11: #{attention_gate_forward.1} parent=5 // pred_region
        %s209 = ssub.s32 %s15, 1
        // Predicated region
        $region13: #{attention_gate_forward.1} parent=11 // pred_check
          %p210 = pneg %p104
        $region14: #{attention_gate_forward.1} parent=11 // pred_check_branch
          %212 = sbr.rel (%p210) target = $region16
        $region15: #{attention_gate_forward.1} parent=11 // pred_region
          %s214 = ssub.s32 64, 64
          %215 = vsyncadd [#allocation4], %s214
          %s217 = sshll.u32 %s2, 4
          %s218 = int_to_ptr.vmem [resolvable:$true] %s217
          %220 = dma.vmem_to_smem %s218, 64, [#allocation3], [#allocation4]
        $region16: #{attention_gate_forward.1} parent=11 // pred_fallthru
          _
        // Predicated region
        $region17: #{attention_gate_forward.1} parent=11 // pred_check
          %p221 = pneg %p125
        $region18: #{attention_gate_forward.1} parent=11 // pred_check_branch
          %223 = sbr.rel (%p221) target = $region20
        $region19: #{attention_gate_forward.1} parent=11 // pred_region
          %s225 = ssub.s32 16, 16
          %226 = vsyncadd [#allocation6], %s225
          %s228 = sshll.u32 %s3, 4
          %s229 = int_to_ptr.vmem [resolvable:$true] %s228
          %231 = dma.vmem_to_smem %s229, 16, [#allocation5], [#allocation6]
        $region20: #{attention_gate_forward.1} parent=11 // pred_fallthru
          _
        // Predicated region
        $region21: #{attention_gate_forward.1} parent=11 // pred_check
          %p232 = pneg %p146
        $region22: #{attention_gate_forward.1} parent=11 // pred_check_branch
          %234 = sbr.rel (%p232) target = $region24
        $region23: #{attention_gate_forward.1} parent=11 // pred_region
          %s236 = ssub.s32 16, 16
          %237 = vsyncadd [#allocation6], %s236
          %s239 = sshll.u32 %s4, 4
          %s240 = int_to_ptr.vmem [resolvable:$true] %s239
          %242 = dma.vmem_to_smem %s240, 16, [#allocation7], [#allocation6]
        $region24: #{attention_gate_forward.1} parent=11 // pred_fallthru
          _
        // Predicated region
        $region25: #{attention_gate_forward.1} parent=11 // pred_check
          %p243 = pneg %p167
        $region26: #{attention_gate_forward.1} parent=11 // pred_check_branch
          %245 = sbr.rel (%p243) target = $region28
        $region27: #{attention_gate_forward.1} parent=11 // pred_region
          _
        $region28: #{attention_gate_forward.1} parent=11 // pred_fallthru
          _
      $region12: #{attention_gate_forward.1} parent=5 // pred_fallthru
        _
      %p246 = scmp.lt.s32.totalorder %s15, 2
      // Predicated region
      $region29: #{attention_gate_forward.1} parent=5 // pred_check
        %p247 = pneg %p246
      $region30: #{attention_gate_forward.1} parent=5 // pred_check_branch
        %249 = sbr.rel (%p247) target = $region32
      $region31: #{attention_gate_forward.1} parent=5 // pred_region
        // Predicated region
        $region33: #{attention_gate_forward.1} parent=31 // pred_check
          %p250 = pneg %p49
        $region34: #{attention_gate_forward.1} parent=31 // pred_check_branch
          %252 = sbr.rel (%p250) target = $region36
        $region35: #{attention_gate_forward.1} parent=31 // pred_region
          %p253 = scmp.lt.s32.totalorder %s22, 1
          %s254 = scalar_select %p253, %s22, 1
          %p255 = scmp.lt.s32.totalorder %s23, 0
          %s256 = scalar_select %p255, %s23, 0
          %s257 = smul.addr %s254, 4
          %s258 = sadd.s32 %s256, %s257
          %s259 = smul.addr %s258, 2
          %s260 = scalar_lea.vmem %s0, %s259
        $region36: #{attention_gate_forward.1} parent=31 // pred_fallthru
          _
        // Predicated region
        $region37: #{attention_gate_forward.1} parent=31 // pred_check
          %p261 = pneg %p77
        $region38: #{attention_gate_forward.1} parent=31 // pred_check_branch
          %263 = sbr.rel (%p261) target = $region40
        $region39: #{attention_gate_forward.1} parent=31 // pred_region
          %p264 = scmp.lt.s32.totalorder %s22, 1
          %s265 = scalar_select %p264, %s22, 1
          %p266 = scmp.lt.s32.totalorder %s23, 0
          %s267 = scalar_select %p266, %s23, 0
          %s268 = smul.addr %s265, 2
          %s269 = sadd.s32 %s267, %s268
          %s270 = smul.addr %s269, 2
          %s271 = scalar_lea.vmem %s1, %s270
        $region40: #{attention_gate_forward.1} parent=31 // pred_fallthru
          _
      $region32: #{attention_gate_forward.1} parent=5 // pred_fallthru
        _
      %p272 = scmp.le.s32.totalorder 1, %s15
      %p273 = scmp.lt.s32.totalorder %s15, 3
      %p274 = pnand %p272, %p273
      %p275 = pneg %p274
      // Predicated region
      $region41: #{attention_gate_forward.1} parent=5 // pred_check
        _
      $region42: #{attention_gate_forward.1} parent=5 // pred_check_branch
        %277 = sbr.rel (%p274) target = $region44
      $region43: #{attention_gate_forward.1} parent=5 // pred_region
        %s278 = ssub.s32 %s15, 1
        // Predicated region
        $region45: #{attention_gate_forward.1} parent=43 // pred_check
          %p279 = pneg %p104
        $region46: #{attention_gate_forward.1} parent=43 // pred_check_branch
          %281 = sbr.rel (%p279) target = $region48
        $region47: #{attention_gate_forward.1} parent=43 // pred_region
          %282 = dma.done [#allocation4], 64
        $region48: #{attention_gate_forward.1} parent=43 // pred_fallthru
          _
        // Predicated region
        $region49: #{attention_gate_forward.1} parent=43 // pred_check
          %p283 = pneg %p125
        $region50: #{attention_gate_forward.1} parent=43 // pred_check_branch
          %285 = sbr.rel (%p283) target = $region52
        $region51: #{attention_gate_forward.1} parent=43 // pred_region
          %286 = dma.done [#allocation6], 16
        $region52: #{attention_gate_forward.1} parent=43 // pred_fallthru
          _
        // Predicated region
        $region53: #{attention_gate_forward.1} parent=43 // pred_check
          %p287 = pneg %p146
        $region54: #{attention_gate_forward.1} parent=43 // pred_check_branch
          %289 = sbr.rel (%p287) target = $region56
        $region55: #{attention_gate_forward.1} parent=43 // pred_region
          %290 = dma.done [#allocation6], 16
        $region56: #{attention_gate_forward.1} parent=43 // pred_fallthru
          _
        %291 = sfence
        %p292 = scmp.lt.s32.totalorder %s24, 1
        %s293 = scalar_select %p292, %s24, 1
        %p294 = scmp.lt.s32.totalorder %s25, 0
        %s295 = scalar_select %p294, %s25, 0
        %s296 = smul.addr %s293, 4
        %s297 = sadd.s32 %s295, %s296
        %s298 = smul.addr %s297, 2
        %s299 = scalar_lea.vmem %s0, %s298
        %p300 = pneg %p55
        %p301 = pneg %p52
        %p302 = scmp.lt.s32.totalorder %s24, 1
        %s303 = scalar_select %p302, %s24, 1
        %p304 = scmp.lt.s32.totalorder %s25, 0
        %s305 = scalar_select %p304, %s25, 0
        %s306 = smul.addr %s303, 2
        %s307 = sadd.s32 %s305, %s306
        %s308 = smul.addr %s307, 2
        %s309 = scalar_lea.vmem %s1, %s308
        %p310 = pneg %p83
        %p311 = pneg %p80
        %p312 = pneg %p104
        %p313 = pneg %p101
        %p314 = pneg %p125
        %p315 = pneg %p122
        %p316 = pneg %p146
        %p317 = pneg %p143
        %p318 = pneg %p167
        %p319 = pneg %p164
        %p320 = pneg %p195
        %p321 = pneg %p192
        %p322 = scmp.lt.s32.totalorder %s24, 1
        %s323 = scalar_select %p322, %s24, 1
        %p324 = scmp.lt.s32.totalorder %s25, 0
        %s325 = scalar_select %p324, %s25, 0
        %s326 = smul.addr %s323, 4
        %s327 = sadd.s32 %s325, %s326
        %s328 = smul.addr %s327, 2
        %s329 = scalar_lea.vmem %s6, %s328
        %p330 = scmp.lt.s32.totalorder %s24, 1
        %s331 = scalar_select %p330, %s24, 1
        %p332 = scmp.lt.s32.totalorder %s25, 0
        %s333 = scalar_select %p332, %s25, 0
        %s334 = smul.addr %s331, 4
        %s335 = sadd.s32 %s333, %s334
        %s336 = smul.addr %s335, 2
        %s337 = scalar_lea.vmem %s0, %s336
        %p338 = scmp.lt.s32.totalorder %s24, 1
        %s339 = scalar_select %p338, %s24, 1
        %p340 = scmp.lt.s32.totalorder %s25, 0
        %s341 = scalar_select %p340, %s25, 0
        %s342 = smul.addr %s339, 2
        %s343 = sadd.s32 %s341, %s342
        %s344 = smul.addr %s343, 2
        %s345 = scalar_lea.vmem %s1, %s344
        %p346 = scmp.lt.s32.totalorder %s24, 1
        %s347 = scalar_select %p346, %s24, 1
        %p348 = scmp.lt.s32.totalorder %s25, 0
        %s349 = scalar_select %p348, %s25, 0
        %s350 = smul.addr %s347, 4
        %s351 = sadd.s32 %s349, %s350
        %s352 = smul.addr %s351, 2
        %s353 = scalar_lea.vmem %s6, %s352
        %s354 = sld [smem:[#allocation2]]
        %v355 = vstv %s354
        %v356 = vadd.f32 %v355, 0.0
        %v357 = vld [vmem:[%s345] sm:$0x3]
        %s358 = sld [smem:[#allocation5]]
        %v359 = vstv %s358
        %v360 = vadd.f32 %v357, %v359
        %s361 = sld [smem:[#allocation3]]
        %v362 = vld [vmem:[%s337] sm:$0x3]
        %v363 = vstv %s361
        %v364 = vmul.f32 %v363, %v362
        %v365 = vadd.f32 %v360, %v364
        %s366 = sld [smem:[#allocation3 + $0x80]]
        %s367 = scalar_lea.vmem %s337, 2
        %v368 = vld [vmem:[%s367] sm:$0x3]
        %v369 = vstv %s366
        %v370 = vmul.f32 %v369, %v368
        %v371 = vadd.f32 %v365, %v370
        %s372 = sld [smem:[#allocation3 + $0x100]]
        %s373 = scalar_lea.vmem %s337, 4
        %v374 = vld [vmem:[%s373] sm:$0x3]
        %v375 = vstv %s372
        %v376 = vmul.f32 %v375, %v374
        %v377 = vadd.f32 %v371, %v376
        %s378 = sld [smem:[#allocation3 + $0x180]]
        %s379 = scalar_lea.vmem %s337, 6
        %v380 = vld [vmem:[%s379] sm:$0x3]
        %v381 = vstv %s378
        %v382 = vmul.f32 %v381, %v380
        %v383 = vadd.f32 %v377, %v382
        %s384 = sld [smem:[#allocation7]]
        %v385 = vmax.f32 %v383, 0.0
        %v386 = vstv %s384
        %v387 = vmul.f32 %v386, %v385
        %v388 = vadd.f32 %v356, %v387
        %s389 = scalar_lea.vmem %s345, 2
        %v390 = vld [vmem:[%s389] sm:$0x3]
        %s391 = sld [smem:[#allocation5 + $0x1]]
        %v392 = vstv %s391
        %v393 = vadd.f32 %v390, %v392
        %s394 = sld [smem:[#allocation3 + $0x1]]
        %v395 = vstv %s394
        %v396 = vmul.f32 %v395, %v362
        %v397 = vadd.f32 %v393, %v396
        %s398 = sld [smem:[#allocation3 + $0x81]]
        %v399 = vstv %s398
        %v400 = vmul.f32 %v399, %v368
        %v401 = vadd.f32 %v397, %v400
        %s402 = sld [smem:[#allocation3 + $0x101]]
        %v403 = vstv %s402
        %v404 = vmul.f32 %v403, %v374
        %v405 = vadd.f32 %v401, %v404
        %s406 = sld [smem:[#allocation3 + $0x181]]
        %v407 = vstv %s406
        %v408 = vmul.f32 %v407, %v380
        %v409 = vadd.f32 %v405, %v408
        %s410 = sld [smem:[#allocation7 + $0x1]]
        %v411 = vmax.f32 %v409, 0.0
        %v412 = vstv %s410
        %v413 = vmul.f32 %v412, %v411
        %v414 = vadd.f32 %v388, %v413
        %v415 = vxor.u32 %v414, 2147483648
        %v416 = vmul.f32 %v415, 1.442695
        %v417 = vpow.pop %v416
        %v418 = vadd.f32 %v417, 1.0
        %v419 = vrcp.pop %v418
        %v420 = vmul.f32 1.0, %v419
        %v421 = vmul.f32 %v362, %v420
        %422 = vst [vmem:[%s353] sm:$0x3] %v421
        %v423 = vld [vmem:[%s367] sm:$0x3]
        %v424 = vmul.f32 %v423, %v420
        %s425 = scalar_lea.vmem %s353, 2
        %426 = vst [vmem:[%s425] sm:$0x3] %v424
        %v427 = vld [vmem:[%s373] sm:$0x3]
        %v428 = vmul.f32 %v427, %v420
        %s429 = scalar_lea.vmem %s353, 4
        %430 = vst [vmem:[%s429] sm:$0x3] %v428
        %v431 = vld [vmem:[%s379] sm:$0x3]
        %v432 = vmul.f32 %v431, %v420
        %s433 = scalar_lea.vmem %s353, 6
        %434 = vst [vmem:[%s433] sm:$0x3] %v432
        %p435 = scmp.lt.s32.totalorder %s24, 1
        %s436 = scalar_select %p435, %s24, 1
        %p437 = scmp.lt.s32.totalorder %s25, 0
        %s438 = scalar_select %p437, %s25, 0
        %s439 = smul.addr %s436, 4
        %s440 = sadd.s32 %s438, %s439
        %s441 = smul.addr %s440, 2
        %s442 = scalar_lea.vmem %s6, %s441
        // Predicated region
        $region57: #{attention_gate_forward.1} parent=43 // pred_check
          %p443 = pneg %p192
        $region58: #{attention_gate_forward.1} parent=43 // pred_check_branch
          %445 = sbr.rel (%p443) target = $region60
        $region59: #{attention_gate_forward.1} parent=43 // pred_region
          _
        $region60: #{attention_gate_forward.1} parent=43 // pred_fallthru
          _
      $region44: #{attention_gate_forward.1} parent=5 // pred_fallthru
        _
      %p446 = scmp.le.s32.totalorder 2, %s15
      // Predicated region
      $region61: #{attention_gate_forward.1} parent=5 // pred_check
        %p447 = pneg %p446
      $region62: #{attention_gate_forward.1} parent=5 // pred_check_branch
        %449 = sbr.rel (%p447) target = $region64
      $region63: #{attention_gate_forward.1} parent=5 // pred_region
        %s450 = ssub.s32 %s15, 2
        // Predicated region
        $region65: #{attention_gate_forward.1} parent=63 // pred_check
          %p451 = pneg %p198
        $region66: #{attention_gate_forward.1} parent=63 // pred_check_branch
          %453 = sbr.rel (%p451) target = $region68
        $region67: #{attention_gate_forward.1} parent=63 // pred_region
          %p454 = scmp.lt.s32.totalorder %s26, 1
          %s455 = scalar_select %p454, %s26, 1
          %p456 = scmp.lt.s32.totalorder %s27, 0
          %s457 = scalar_select %p456, %s27, 0
          %s458 = smul.addr %s455, 4
          %s459 = sadd.s32 %s457, %s458
          %s460 = smul.addr %s459, 2
          %s461 = scalar_lea.vmem %s6, %s460
        $region68: #{attention_gate_forward.1} parent=63 // pred_fallthru
          _
      $region64: #{attention_gate_forward.1} parent=5 // pred_fallthru
        _
    $region6: #{attention_gate_forward.1} parent=1 // loop_footer
      %s19 = sadd.s32 1, %s15
    $region7: #{attention_gate_forward.1} parent=1 // loop_footer_branch
      %14 = sbr.rel target = $region3
    $region8: #{attention_gate_forward.1} parent=1 // loop_exit
      _
    %462 = vsyncpa [#allocation4], 1
    %s463 = scalar_lea.sflag [#allocation4], 1
    %464 = vsyncpa %s463, 1
    %465 = vsyncpa [#allocation6], 1

</llo_original>
